<compile_context>
chip_gen: v6e
topology: v6e:2x2x1
jax: 0.10.0
libtpu: 0.0.40
codegen_flags: <defaults>
</compile_context>

<pallas_src>
import functools

import jax
import jax.numpy as jnp
from jax.experimental import pallas as pl
from jax.experimental.pallas import tpu as pltpu

WIN = 21
EPS = 1e-5

_LANE = 128
_SUBLANE = 8
_LANE_CAP = 256   # target lane extent after folding (MXU width on v6e/v7x)
_SUB_CAP = 256    # target sublane extent after folding


def _round_up(x, m):
    return (x + m - 1) // m * m


def _choose_fold(n, dim, cap):
    """Largest divisor k of n with k * dim <= cap (at least 1)."""
    best = 1
    for k in range(1, n + 1):
        if n % k == 0 and k * dim <= cap:
            best = k
    return best


def _hi_lo_bf16(x):
    """Split f32 x into two bf16 parts with x ~= hi + lo (near-f32 accuracy)."""
    hi = x.astype(jnp.bfloat16)
    lo = (x - hi.astype(jnp.float32)).astype(jnp.bfloat16)
    return hi, lo


def _ncc_kernel(i_ref, j_ref, ah_ref, aw_ref, out_ref, *, win, eps):
    I = i_ref[0]          # (Hp, Lp) float32 folded slab
    J = j_ref[0]
    ah = ah_ref[...]      # (Hp, Hp) bf16, exact 0/1 block-diagonal band
    aw = aw_ref[...]      # (Lp, Lp) bf16, exact 0/1 block-diagonal band

    Hp, Lp = I.shape

    # Five moment maps stacked along sublanes: (5*Hp, Lp).
    S = jnp.concatenate([I, J, I * I, J * J, I * J], axis=0)

    # Column (W-direction) box sum: one wide matmul, f32 operand split hi/lo
    # into two native bf16 MXU passes (band entries are exact in bf16).
    s_hi, s_lo = _hi_lo_bf16(S)
    U = (jnp.dot(s_hi, aw, preferred_element_type=jnp.float32)
         + jnp.dot(s_lo, aw, preferred_element_type=jnp.float32))

    # Restack along lanes for the row (H-direction) pass: (Hp, 5*Lp).
    T = jnp.concatenate([U[k * Hp:(k + 1) * Hp] for k in range(5)], axis=1)
    t_hi, t_lo = _hi_lo_bf16(T)
    V = (jnp.dot(ah, t_hi, preferred_element_type=jnp.float32)
         + jnp.dot(ah, t_lo, preferred_element_type=jnp.float32))

    I_sum = V[:, 0 * Lp:1 * Lp]
    J_sum = V[:, 1 * Lp:2 * Lp]
    I2_sum = V[:, 2 * Lp:3 * Lp]
    J2_sum = V[:, 3 * Lp:4 * Lp]
    IJ_sum = V[:, 4 * Lp:5 * Lp]

    # Algebraically simplified statistics (u_I/u_J eliminated, no divides).
    inv_ws = jnp.float32(1.0 / float(win * win))
    cross = IJ_sum - I_sum * J_sum * inv_ws
    I_var = I2_sum - I_sum * I_sum * inv_ws
    J_var = J2_sum - J_sum * J_sum * inv_ws
    cc = cross * cross / (I_var * J_var + jnp.float32(eps))

    # Partial-reduce to one vreg-shaped (8, 128) tile: pure VPU adds (no XLU).
    part = jnp.zeros((_SUBLANE, _LANE), jnp.float32)
    for r in range(Hp // _SUBLANE):
        for c in range(Lp // _LANE):
            part = part + cc[r * _SUBLANE:(r + 1) * _SUBLANE,
                             c * _LANE:(c + 1) * _LANE]
    out_ref[0] = part


def _block_band(n_blocks, blk, pad, half, dtype):
    """Block-diagonal band matrix (n_blocks blocks of (blk, blk)), zero-padded
    out to (pad, pad).  Entries are exactly 0/1 (exact in bf16)."""
    size = n_blocks * blk
    idx = jnp.arange(size)
    b = idx // blk
    p = idx % blk
    m = (b[:, None] == b[None, :]) & (jnp.abs(p[:, None] - p[None, :]) <= half)
    full = jnp.zeros((pad, pad), dtype)
    return full.at[:size, :size].set(m.astype(dtype))


def ncc_pallas(I, J, win=WIN, eps=EPS):
    """I, J: (B, C, H, W) arrays.  Returns scalar float32: 1 - mean(cc)."""
    B, C, H, W = I.shape
    N = B * C
    half = win // 2

    # Fold batch slices into the lane (W) axis first, then the sublane (H) axis.
    kw = _choose_fold(N, W, max(_LANE_CAP, W))
    kh = _choose_fold(N // kw, H, max(_SUB_CAP, H))
    nb = N // (kw * kh)

    Hf, Lf = kh * H, kw * W
    Hp, Lp = _round_up(Hf, _SUBLANE), _round_up(Lf, _LANE)

    def fold(x):
        x = x.reshape(nb, kh, kw, H, W).transpose(0, 1, 3, 2, 4)
        x = x.reshape(nb, Hf, Lf).astype(jnp.float32)
        # Zero padding: padded pixels yield cc == 0 and never leak into real
        # pixels (they sit outside every band block), so the mean is unchanged.
        return jnp.pad(x, ((0, 0), (0, Hp - Hf), (0, Lp - Lf)))

    If = fold(I.reshape(N, H, W))
    Jf = fold(J.reshape(N, H, W))

    ah = _block_band(kh, H, Hp, half, jnp.bfloat16)
    aw = _block_band(kw, W, Lp, half, jnp.bfloat16)

    total = float(N * H * W)
    kernel = functools.partial(_ncc_kernel, win=win, eps=eps)

    # Explicit VMEM budget: double-buffered inputs/bands/output + temporaries.
    vmem_bytes = (2 * 2 * Hp * Lp * 4            # I, J blocks (double-buffered)
                  + 2 * (Hp * Hp + Lp * Lp) * 2  # bf16 band matrices
                  + 2 * _SUBLANE * _LANE * 4     # partial-sum output blocks
                  + 40 * Hp * Lp * 4)            # in-kernel temporaries
    vmem_limit = int(min(32 * 1024 * 1024, max(4 * 1024 * 1024, 2 * vmem_bytes)))

    partials = pl.pallas_call(
        kernel,
        out_shape=jax.ShapeDtypeStruct((nb, _SUBLANE, _LANE), jnp.float32),
        grid_spec=pltpu.PrefetchScalarGridSpec(
            num_scalar_prefetch=0,
            grid=(nb,),
            in_specs=[
                pl.BlockSpec((1, Hp, Lp), lambda n: (n, 0, 0)),
                pl.BlockSpec((1, Hp, Lp), lambda n: (n, 0, 0)),
                pl.BlockSpec((Hp, Hp), lambda n: (0, 0)),
                pl.BlockSpec((Lp, Lp), lambda n: (0, 0)),
            ],
            out_specs=pl.BlockSpec((1, _SUBLANE, _LANE), lambda n: (n, 0, 0)),
        ),
        compiler_params=pltpu.CompilerParams(
            dimension_semantics=("parallel",),
            vmem_limit_bytes=vmem_limit),
    )(If, Jf, ah, aw)

    return (1.0 - jnp.sum(partials) / jnp.float32(total)).astype(jnp.float32)


# ---- pure-JAX reference (mirrors the PyTorch cumsum implementation) ----
def _window_sum_cs2d_ref(x, win):
    half = win // 2
    xp = jnp.pad(x, ((0, 0), (0, 0), (half + 1, half), (half + 1, half)))
    cs = jnp.cumsum(jnp.cumsum(xp, axis=2), axis=3)
    h, w = x.shape[2:]
    return (cs[:, :, win:, win:] - cs[:, :, win:, :w]
            - cs[:, :, :h, win:] + cs[:, :, :h, :w])


def ncc_ref(I, J, win=WIN, eps=EPS):
    I = I.astype(jnp.float32)
    J = J.astype(jnp.float32)
    I2, J2, IJ = I * I, J * J, I * J
    I_s = _window_sum_cs2d_ref(I, win)
    J_s = _window_sum_cs2d_ref(J, win)
    I2_s = _window_sum_cs2d_ref(I2, win)
    J2_s = _window_sum_cs2d_ref(J2, win)
    IJ_s = _window_sum_cs2d_ref(IJ, win)
    ws = float(win) ** 2
    uI, uJ = I_s / ws, J_s / ws
    cross = IJ_s - uJ * I_s - uI * J_s + uI * uJ * ws
    I_var = I2_s - 2 * uI * I_s + uI * uI * ws
    J_var = J2_s - 2 * uJ * J_s + uJ * uJ * ws
    cc = cross * cross / (I_var * J_var + eps)
    return (1.0 - jnp.mean(cc)).astype(jnp.float32)


if __name__ == "__main__":
    key = jax.random.PRNGKey(0)
    k1, k2 = jax.random.split(key)
    B, C, H, W = 2, 4, 16, 16
    I = jax.random.normal(k1, (B, C, H, W), dtype=jnp.float32)
    J = 0.7 * I + 0.3 * jax.random.normal(k2, (B, C, H, W), dtype=jnp.float32)

    out = ncc_pallas(I, J)
    jax.block_until_ready(out)

    ref = ncc_ref(I, J)
    assert jnp.abs(out - ref) < 1e-3, f"mismatch: pallas={out}, ref={ref}"
    print("KERNEL_OK")
</pallas_src>

<mosaic_0001>
module attributes {stable_mosaic.version = 11 : i64} {
  func.func @_ncc_kernel(%arg0: i32, %arg1: memref<1x16x128xf32, #tpu.memory_space<vmem>>, %arg2: memref<1x16x128xf32, #tpu.memory_space<vmem>>, %arg3: memref<16x16xbf16, #tpu.memory_space<vmem>>, %arg4: memref<128x128xbf16, #tpu.memory_space<vmem>>, %arg5: memref<1x8x128xf32, #tpu.memory_space<vmem>>) attributes {dimension_semantics = [#tpu.dimension_semantics<parallel>], iteration_bounds = array<i64: 1>, scalar_prefetch = 0 : i64, scratch_operands = 0 : i64, tpu.core_type = #tpu.core_type<tc>, window_params = [{transform_indices = @transform_0, window_bounds = array<i64: 1, 16, 128>}, {transform_indices = @transform_1, window_bounds = array<i64: 1, 16, 128>}, {pipeline_mode = #tpu.pipeline_mode<synchronous>, transform_indices = @transform_2, window_bounds = array<i64: 16, 16>}, {pipeline_mode = #tpu.pipeline_mode<synchronous>, transform_indices = @transform_3, window_bounds = array<i64: 128, 128>}, {transform_indices = @transform_4, window_bounds = array<i64: 1, 8, 128>}]} {
    %c0 = arith.constant 0 : index
    %c0_0 = arith.constant 0 : index
    %c0_1 = arith.constant 0 : index
    %0 = vector.load %arg1[%c0, %c0_0, %c0_1] : memref<1x16x128xf32, #tpu.memory_space<vmem>>, vector<1x16x128xf32>
    %1 = vector.shape_cast %0 : vector<1x16x128xf32> to vector<16x128xf32>
    %c0_2 = arith.constant 0 : index
    %c0_3 = arith.constant 0 : index
    %c0_4 = arith.constant 0 : index
    %2 = vector.load %arg2[%c0_2, %c0_3, %c0_4] : memref<1x16x128xf32, #tpu.memory_space<vmem>>, vector<1x16x128xf32>
    %3 = vector.shape_cast %2 : vector<1x16x128xf32> to vector<16x128xf32>
    %c0_5 = arith.constant 0 : index
    %c0_6 = arith.constant 0 : index
    %4 = vector.load %arg3[%c0_5, %c0_6] : memref<16x16xbf16, #tpu.memory_space<vmem>>, vector<16x16xbf16>
    %c0_7 = arith.constant 0 : index
    %c0_8 = arith.constant 0 : index
    %5 = vector.load %arg4[%c0_7, %c0_8] : memref<128x128xbf16, #tpu.memory_space<vmem>>, vector<128x128xbf16>
    %6 = arith.mulf %1, %1 : vector<16x128xf32>
    %7 = arith.mulf %3, %3 : vector<16x128xf32>
    %8 = arith.mulf %1, %3 : vector<16x128xf32>
    %9 = tpu.concatenate %1, %3, %6, %7, %8 in 0 : vector<16x128xf32>, vector<16x128xf32>, vector<16x128xf32>, vector<16x128xf32>, vector<16x128xf32> -> vector<80x128xf32>
    %10 = arith.truncf %9 : vector<80x128xf32> to vector<80x128xbf16>
    %11 = arith.extf %10 : vector<80x128xbf16> to vector<80x128xf32>
    %12 = arith.subf %9, %11 : vector<80x128xf32>
    %13 = arith.truncf %12 : vector<80x128xf32> to vector<80x128xbf16>
    %cst = arith.constant dense<0.000000e+00> : vector<80x128xf32>
    %14 = tpu.matmul %10, %5, %cst {dimension_numbers = #tpu.dot_dimension_numbers<[1], [0], [0], [1], [0, 0, 1, 1], [], []>} : vector<80x128xbf16>, vector<128x128xbf16>, vector<80x128xf32> -> vector<80x128xf32>
    %cst_9 = arith.constant dense<0.000000e+00> : vector<80x128xf32>
    %15 = tpu.matmul %13, %5, %cst_9 {dimension_numbers = #tpu.dot_dimension_numbers<[1], [0], [0], [1], [0, 0, 1, 1], [], []>} : vector<80x128xbf16>, vector<128x128xbf16>, vector<80x128xf32> -> vector<80x128xf32>
    %16 = arith.addf %14, %15 : vector<80x128xf32>
    %17 = vector.extract_strided_slice %16 {offsets = [0, 0], sizes = [16, 128], strides = [1, 1]} : vector<80x128xf32> to vector<16x128xf32>
    %18 = vector.extract_strided_slice %16 {offsets = [16, 0], sizes = [16, 128], strides = [1, 1]} : vector<80x128xf32> to vector<16x128xf32>
    %19 = vector.extract_strided_slice %16 {offsets = [32, 0], sizes = [16, 128], strides = [1, 1]} : vector<80x128xf32> to vector<16x128xf32>
    %20 = vector.extract_strided_slice %16 {offsets = [48, 0], sizes = [16, 128], strides = [1, 1]} : vector<80x128xf32> to vector<16x128xf32>
    %21 = vector.extract_strided_slice %16 {offsets = [64, 0], sizes = [16, 128], strides = [1, 1]} : vector<80x128xf32> to vector<16x128xf32>
    %22 = tpu.concatenate %17, %18, %19, %20, %21 in 1 : vector<16x128xf32>, vector<16x128xf32>, vector<16x128xf32>, vector<16x128xf32>, vector<16x128xf32> -> vector<16x640xf32>
    %23 = arith.truncf %22 : vector<16x640xf32> to vector<16x640xbf16>
    %24 = arith.extf %23 : vector<16x640xbf16> to vector<16x640xf32>
    %25 = arith.subf %22, %24 : vector<16x640xf32>
    %26 = arith.truncf %25 : vector<16x640xf32> to vector<16x640xbf16>
    %cst_10 = arith.constant dense<0.000000e+00> : vector<16x640xf32>
    %27 = tpu.matmul %4, %23, %cst_10 {dimension_numbers = #tpu.dot_dimension_numbers<[1], [0], [0], [1], [0, 0, 1, 1], [], []>} : vector<16x16xbf16>, vector<16x640xbf16>, vector<16x640xf32> -> vector<16x640xf32>
    %cst_11 = arith.constant dense<0.000000e+00> : vector<16x640xf32>
    %28 = tpu.matmul %4, %26, %cst_11 {dimension_numbers = #tpu.dot_dimension_numbers<[1], [0], [0], [1], [0, 0, 1, 1], [], []>} : vector<16x16xbf16>, vector<16x640xbf16>, vector<16x640xf32> -> vector<16x640xf32>
    %29 = arith.addf %27, %28 : vector<16x640xf32>
    %30 = vector.extract_strided_slice %29 {offsets = [0, 0], sizes = [16, 128], strides = [1, 1]} : vector<16x640xf32> to vector<16x128xf32>
    %31 = vector.extract_strided_slice %29 {offsets = [0, 128], sizes = [16, 128], strides = [1, 1]} : vector<16x640xf32> to vector<16x128xf32>
    %32 = vector.extract_strided_slice %29 {offsets = [0, 256], sizes = [16, 128], strides = [1, 1]} : vector<16x640xf32> to vector<16x128xf32>
    %33 = vector.extract_strided_slice %29 {offsets = [0, 384], sizes = [16, 128], strides = [1, 1]} : vector<16x640xf32> to vector<16x128xf32>
    %34 = vector.extract_strided_slice %29 {offsets = [0, 512], sizes = [16, 128], strides = [1, 1]} : vector<16x640xf32> to vector<16x128xf32>
    %35 = arith.mulf %30, %31 : vector<16x128xf32>
    %cst_12 = arith.constant 0.00226757373 : f32
    %36 = vector.broadcast %cst_12 : f32 to vector<16x128xf32>
    %37 = arith.mulf %35, %36 : vector<16x128xf32>
    %38 = arith.subf %34, %37 : vector<16x128xf32>
    %39 = arith.mulf %30, %30 : vector<16x128xf32>
    %cst_13 = arith.constant 0.00226757373 : f32
    %40 = vector.broadcast %cst_13 : f32 to vector<16x128xf32>
    %41 = arith.mulf %39, %40 : vector<16x128xf32>
    %42 = arith.subf %32, %41 : vector<16x128xf32>
    %43 = arith.mulf %31, %31 : vector<16x128xf32>
    %cst_14 = arith.constant 0.00226757373 : f32
    %44 = vector.broadcast %cst_14 : f32 to vector<16x128xf32>
    %45 = arith.mulf %43, %44 : vector<16x128xf32>
    %46 = arith.subf %33, %45 : vector<16x128xf32>
    %47 = arith.mulf %38, %38 : vector<16x128xf32>
    %48 = arith.mulf %42, %46 : vector<16x128xf32>
    %cst_15 = arith.constant 9.99999974E-6 : f32
    %49 = vector.broadcast %cst_15 : f32 to vector<16x128xf32>
    %50 = arith.addf %48, %49 : vector<16x128xf32>
    %51 = arith.divf %47, %50 : vector<16x128xf32>
    %cst_16 = arith.constant 0.000000e+00 : f32
    %52 = vector.broadcast %cst_16 : f32 to vector<8x128xf32>
    %53 = vector.extract_strided_slice %51 {offsets = [0, 0], sizes = [8, 128], strides = [1, 1]} : vector<16x128xf32> to vector<8x128xf32>
    %54 = arith.addf %52, %53 : vector<8x128xf32>
    %55 = vector.extract_strided_slice %51 {offsets = [8, 0], sizes = [8, 128], strides = [1, 1]} : vector<16x128xf32> to vector<8x128xf32>
    %56 = arith.addf %54, %55 : vector<8x128xf32>
    %c0_17 = arith.constant 0 : index
    %c0_18 = arith.constant 0 : index
    %c0_19 = arith.constant 0 : index
    %57 = vector.load %arg5[%c0_17, %c0_18, %c0_19] : memref<1x8x128xf32, #tpu.memory_space<vmem>>, vector<1x8x128xf32>
    %58 = vector.shape_cast %57 : vector<1x8x128xf32> to vector<8x128xf32>
    %59 = vector.shape_cast %56 : vector<8x128xf32> to vector<1x8x128xf32>
    tpu.vector_store %arg5[%c0_17, %c0_18, %c0_19], %59 {strides = array<i32>} : memref<1x8x128xf32, #tpu.memory_space<vmem>>, vector<1x8x128xf32>,
    return
  }
  func.func @transform_0(%arg0: i32) -> (i32, i32, i32) {
    %c0_i32 = arith.constant 0 : i32
    %c0_i32_0 = arith.constant 0 : i32
    %c0_i32_1 = arith.constant 0 : i32
    return %arg0, %c0_i32, %c0_i32_0 : i32, i32, i32
  }
  func.func @transform_1(%arg0: i32) -> (i32, i32, i32) {
    %c0_i32 = arith.constant 0 : i32
    %c0_i32_0 = arith.constant 0 : i32
    %c0_i32_1 = arith.constant 0 : i32
    return %arg0, %c0_i32, %c0_i32_0 : i32, i32, i32
  }
  func.func @transform_2(%arg0: i32) -> (i32, i32) {
    %c0_i32 = arith.constant 0 : i32
    %c0_i32_0 = arith.constant 0 : i32
    %c0_i32_1 = arith.constant 0 : i32
    return %c0_i32, %c0_i32_0 : i32, i32
  }
  func.func @transform_3(%arg0: i32) -> (i32, i32) {
    %c0_i32 = arith.constant 0 : i32
    %c0_i32_0 = arith.constant 0 : i32
    %c0_i32_1 = arith.constant 0 : i32
    return %c0_i32, %c0_i32_0 : i32, i32
  }
  func.func @transform_4(%arg0: i32) -> (i32, i32, i32) {
    %c0_i32 = arith.constant 0 : i32
    %c0_i32_0 = arith.constant 0 : i32
    %c0_i32_1 = arith.constant 0 : i32
    return %arg0, %c0_i32, %c0_i32_0 : i32, i32, i32
  }
}

</mosaic_0001>

<llo_original>
// kernel: tpu_custom_call.1
$region0: #{tpu_custom_call.1}
  #allocation0 [shape = 'u32[]', space=smem, size = 0x4, offset = 0x4, fixed_abs, tag = 'smem constant byte address 0x4 - core index']
  #allocation1 [shape = 'u32[144,128]{1,0:T(1,128)}', space=vmem, size = 0x12000, scoped, tag = 'internal scratch']
  %s0 = inlined_call_operand.hbm [shape: f32[1,16,128], index: 0, kind: input, shape index: {}]
  %s1 = inlined_call_operand.hbm [shape: f32[1,16,128], index: 1, kind: input, shape index: {}]
  %s2 = inlined_call_operand.hbm [shape: bf16[16,16], index: 2, kind: input, shape index: {}]
  %s3 = inlined_call_operand.hbm [shape: bf16[128,128], index: 3, kind: input, shape index: {}]
  %s4 = inlined_call_operand.hbm [shape: f32[1,8,128], index: 4, kind: output, shape index: {}]
  %s5 = sld [smem:[#allocation0]]
  $region42: #{tpu_custom_call.1} parent=0
    _
  %s7 = ssub.s32 1, %s5
  %s8 = scalar_select 0, %s7, %s5
  $region1: #{tpu_custom_call.1} parent=0
    #allocation2 [shape = 'u8[8192]{0}', space=vmem, size = 0x2000, scoped, tag = 'input window, operand 0, single buffered']
    #allocation3 [shape = 's32[1]{0}', space=sflag, size = 0x4, scoped, tag = 'scoped memory for tpu_custom_call.1']
    #allocation4 [shape = 's32[1]{0}', space=sflag, size = 0x4, scoped, tag = 'scoped memory for tpu_custom_call.1']
    #allocation5 [shape = 'u8[8192]{0}', space=vmem, size = 0x2000, scoped, tag = 'input window, operand 1, single buffered']
    #allocation6 [shape = 's32[1]{0}', space=sflag, size = 0x4, scoped, tag = 'scoped memory for tpu_custom_call.1']
    #allocation7 [shape = 'u8[4096]{0}', space=vmem, size = 0x1000, scoped, tag = 'input window, operand 2, single buffered']
    #allocation8 [shape = 'u8[32768]{0}', space=vmem, size = 0x8000, scoped, tag = 'input window, operand 3, single buffered']
    #allocation9 [shape = 's32[1]{0}', space=sflag, size = 0x4, scoped, tag = 'scoped memory for tpu_custom_call.1']
    #allocation10 [shape = 'u8[4096]{0}', space=vmem, size = 0x1000, scoped, tag = 'output window, operand 0, single buffered']
    %9 = vsyncpa [#allocation3], 0
    %10 = vsyncpa [#allocation6], 0
    %11 = vsyncpa [#allocation9], 0
    %12 = vsyncpa [#allocation4], 0
    // Predicated region
    $region2: #{tpu_custom_call.1} parent=1 // pred_check
      _
    $region3: #{tpu_custom_call.1} parent=1 // pred_check_branch
      %14 = sbr.rel (0) target = $region5
    $region4: #{tpu_custom_call.1} parent=1 // pred_region
      %s16 = ssub.s32 256, 256
      %17 = vsyncadd [#allocation3], %s16
      %s18 = sshll.u32 [#allocation2], 4
      %s19 = int_to_ptr.vmem [resolvable:$true] %s18
      %24 = dma.hbm_to_vmem [thread:$0]  %s0, 256, %s19, [#allocation3], 128, 128, 8
    $region5: #{tpu_custom_call.1} parent=1 // pred_fallthru
      _
    // Predicated region
    $region6: #{tpu_custom_call.1} parent=1 // pred_check
      _
    $region7: #{tpu_custom_call.1} parent=1 // pred_check_branch
      %26 = sbr.rel (0) target = $region9
    $region8: #{tpu_custom_call.1} parent=1 // pred_region
      %s28 = ssub.s32 256, 256
      %29 = vsyncadd [#allocation6], %s28
      %s30 = sshll.u32 [#allocation5], 4
      %s31 = int_to_ptr.vmem [resolvable:$true] %s30
      %36 = dma.hbm_to_vmem [thread:$0]  %s1, 256, %s31, [#allocation6], 128, 128, 8
    $region9: #{tpu_custom_call.1} parent=1 // pred_fallthru
      _
    // Predicated region
    $region10: #{tpu_custom_call.1} parent=1 // pred_check
      _
    $region11: #{tpu_custom_call.1} parent=1 // pred_check_branch
      %38 = sbr.rel (0) target = $region13
    $region12: #{tpu_custom_call.1} parent=1 // pred_region
      %s40 = ssub.s32 128, 128
      %41 = vsyncadd [#allocation6], %s40
      %s42 = sshll.u32 [#allocation7], 4
      %s43 = int_to_ptr.vmem [resolvable:$true] %s42
      %48 = dma.hbm_to_vmem [thread:$0]  %s2, 128, %s43, [#allocation6], 64, 64, 4
    $region13: #{tpu_custom_call.1} parent=1 // pred_fallthru
      _
    // Predicated region
    $region14: #{tpu_custom_call.1} parent=1 // pred_check
      _
    $region15: #{tpu_custom_call.1} parent=1 // pred_check_branch
      %50 = sbr.rel (0) target = $region17
    $region16: #{tpu_custom_call.1} parent=1 // pred_region
      %s52 = ssub.s32 1024, 1024
      %53 = vsyncadd [#allocation9], %s52
      %s54 = sshll.u32 [#allocation8], 4
      %s55 = int_to_ptr.vmem [resolvable:$true] %s54
      %60 = dma.hbm_to_vmem [thread:$0]  %s3, 1024, %s55, [#allocation9], 64, 64, 4
    $region17: #{tpu_custom_call.1} parent=1 // pred_fallthru
      _
    // Predicated region
    $region18: #{tpu_custom_call.1} parent=1 // pred_check
      _
    $region19: #{tpu_custom_call.1} parent=1 // pred_check_branch
      %62 = sbr.rel (0) target = $region21
    $region20: #{tpu_custom_call.1} parent=1 // pred_region
      %63 = dma.done [#allocation3], 256
    $region21: #{tpu_custom_call.1} parent=1 // pred_fallthru
      _
    // Predicated region
    $region22: #{tpu_custom_call.1} parent=1 // pred_check
      _
    $region23: #{tpu_custom_call.1} parent=1 // pred_check_branch
      %65 = sbr.rel (0) target = $region25
    $region24: #{tpu_custom_call.1} parent=1 // pred_region
      %66 = dma.done [#allocation6], 256
    $region25: #{tpu_custom_call.1} parent=1 // pred_fallthru
      _
    // Predicated region
    $region26: #{tpu_custom_call.1} parent=1 // pred_check
      _
    $region27: #{tpu_custom_call.1} parent=1 // pred_check_branch
      %68 = sbr.rel (0) target = $region29
    $region28: #{tpu_custom_call.1} parent=1 // pred_region
      %69 = dma.done [#allocation6], 128
    $region29: #{tpu_custom_call.1} parent=1 // pred_fallthru
      _
    // Predicated region
    $region30: #{tpu_custom_call.1} parent=1 // pred_check
      _
    $region31: #{tpu_custom_call.1} parent=1 // pred_check_branch
      %71 = sbr.rel (0) target = $region33
    $region32: #{tpu_custom_call.1} parent=1 // pred_region
      %72 = dma.done [#allocation9], 1024
    $region33: #{tpu_custom_call.1} parent=1 // pred_fallthru
      _
    %v74 = vld [vmem:[#allocation2] sm:$0xff]
    %v75 = vld [vmem:[#allocation2 + $0x8] sm:$0xff]
    %v76 = vld [vmem:[#allocation5] sm:$0xff]
    %v77 = vld [vmem:[#allocation5 + $0x8] sm:$0xff]
    %v78 = vld [vmem:[#allocation7] sm:$0xf]
    %v79 = vld [vmem:[#allocation7 + $0x4] sm:$0xf]
    %v80 = vld [vmem:[#allocation8] sm:$0xf]
    %v81 = vld [vmem:[#allocation8 + $0x4] sm:$0xf]
    %v82 = vld [vmem:[#allocation8 + $0x8] sm:$0xf]
    %v83 = vld [vmem:[#allocation8 + $0xc] sm:$0xf]
    %v84 = vld [vmem:[#allocation8 + $0x10] sm:$0xf]
    %v85 = vld [vmem:[#allocation8 + $0x14] sm:$0xf]
    %v86 = vld [vmem:[#allocation8 + $0x18] sm:$0xf]
    %v87 = vld [vmem:[#allocation8 + $0x1c] sm:$0xf]
    %v88 = vld [vmem:[#allocation8 + $0x20] sm:$0xf]
    %v89 = vld [vmem:[#allocation8 + $0x24] sm:$0xf]
    %v90 = vld [vmem:[#allocation8 + $0x28] sm:$0xf]
    %v91 = vld [vmem:[#allocation8 + $0x2c] sm:$0xf]
    %v92 = vld [vmem:[#allocation8 + $0x30] sm:$0xf]
    %v93 = vld [vmem:[#allocation8 + $0x34] sm:$0xf]
    %v94 = vld [vmem:[#allocation8 + $0x38] sm:$0xf]
    %v95 = vld [vmem:[#allocation8 + $0x3c] sm:$0xf]
    %v96 = vmul.f32 %v74, %v74
    %v97 = vmul.f32 %v75, %v75
    %v98 = vmul.f32 %v76, %v76
    %v99 = vmul.f32 %v77, %v77
    %v100 = vmul.f32 %v74, %v76
    %v101 = vmul.f32 %v75, %v77
    %v102 = vpack.c.bf16 %v75, %v74
    %v103 = vpack.c.bf16 %v77, %v76
    %v104 = vpack.c.bf16 %v97, %v96
    %v105 = vpack.c.bf16 %v99, %v98
    %v106 = vpack.c.bf16 %v101, %v100
    %v107 = vunpack.c.l.bf16 %v102
    %v108 = vunpack.c.h.bf16 %v102
    %v109 = vunpack.c.l.bf16 %v103
    %v110 = vunpack.c.h.bf16 %v103
    %v111 = vunpack.c.l.bf16 %v104
    %v112 = vunpack.c.h.bf16 %v104
    %v113 = vunpack.c.l.bf16 %v105
    %v114 = vunpack.c.h.bf16 %v105
    %v115 = vunpack.c.l.bf16 %v106
    %v116 = vunpack.c.h.bf16 %v106
    %v117 = vsub.f32 %v74, %v107
    %v118 = vsub.f32 %v75, %v108
    %v119 = vsub.f32 %v76, %v109
    %v120 = vsub.f32 %v77, %v110
    %v121 = vsub.f32 %v96, %v111
    %v122 = vsub.f32 %v97, %v112
    %v123 = vsub.f32 %v98, %v113
    %v124 = vsub.f32 %v99, %v114
    %v125 = vsub.f32 %v100, %v115
    %v126 = vsub.f32 %v101, %v116
    %v127 = vpack.c.bf16 %v118, %v117
    %v128 = vpack.c.bf16 %v120, %v119
    %v129 = vpack.c.bf16 %v122, %v121
    %v130 = vpack.c.bf16 %v124, %v123
    %v131 = vpack.c.bf16 %v126, %v125
    %v148 = vunpack.c.l.b16 %v80
    %v149 = vunpack.c.l.b16 %v81
    %v150 = vunpack.c.l.b16 %v82
    %v151 = vunpack.c.l.b16 %v83
    %v152 = vunpack.c.l.b16 %v84
    %v153 = vunpack.c.l.b16 %v85
    %v154 = vunpack.c.l.b16 %v86
    %v155 = vunpack.c.l.b16 %v87
    %v156 = vunpack.c.l.b16 %v88
    %v157 = vunpack.c.l.b16 %v89
    %v158 = vunpack.c.l.b16 %v90
    %v159 = vunpack.c.l.b16 %v91
    %v160 = vunpack.c.l.b16 %v92
    %v161 = vunpack.c.l.b16 %v93
    %v162 = vunpack.c.l.b16 %v94
    %v163 = vunpack.c.l.b16 %v95
    %v164 = vpack.c.b16 %v149, %v148
    %v165 = vpack.c.b16 %v151, %v150
    %v166 = vpack.c.b16 %v153, %v152
    %v167 = vpack.c.b16 %v155, %v154
    %v168 = vpack.c.b16 %v157, %v156
    %v169 = vpack.c.b16 %v159, %v158
    %v170 = vpack.c.b16 %v161, %v160
    %v171 = vpack.c.b16 %v163, %v162
    %180 = vmatprep.subr.bf16.mxu0 0
    %181 = vmatpush1.bf16.msra.mxu0 %v171
    %182 = vmatprep.subr.bf16.mxu0 0
    %183 = vmatpush1.bf16.msra.mxu0 %v170
    %184 = vmatprep.subr.bf16.mxu0 0
    %185 = vmatpush1.bf16.msra.mxu0 %v169
    %186 = vmatprep.subr.bf16.mxu0 0
    %187 = vmatpush1.bf16.msra.mxu0 %v168
    %188 = vmatprep.subr.bf16.mxu0 0
    %189 = vmatpush1.bf16.msra.mxu0 %v167
    %190 = vmatprep.subr.bf16.mxu0 0
    %191 = vmatpush1.bf16.msra.mxu0 %v166
    %192 = vmatprep.subr.bf16.mxu0 0
    %193 = vmatpush1.bf16.msra.mxu0 %v165
    %194 = vmatprep.subr.bf16.mxu0 0
    %195 = vmatpush1.bf16.msra.mxu0 %v164
    %196 = vmatprep.subr.bf16.mxu0 0
    %197 = vmatpush2.bf16.msra.mxu0 0
    %198 = vmatprep.subr.bf16.mxu0 0
    %199 = vmatpush2.bf16.msra.mxu0 0
    %200 = vmatprep.subr.bf16.mxu0 0
    %201 = vmatpush2.bf16.msra.mxu0 0
    %202 = vmatprep.subr.bf16.mxu0 0
    %203 = vmatpush2.bf16.msra.mxu0 0
    %204 = vmatprep.subr.bf16.mxu0 0
    %205 = vmatpush2.bf16.msra.mxu0 0
    %206 = vmatprep.subr.bf16.mxu0 0
    %207 = vmatpush2.bf16.msra.mxu0 0
    %208 = vmatprep.subr.bf16.mxu0 0
    %209 = vmatpush2.bf16.msra.mxu0 0
    %210 = vmatprep.subr.bf16.mxu0 0
    %211 = vmatpush2.bf16.msra.mxu0 0
    %212 = vmatprep.mubr.bf16.mxu0 0
    %213 = vmatmul.mubr.bf16.gmra.mxu0 %v127
    %v214 = vpop.f32.mrf.mxu0
    %v215 = vadd.f32 0.0, %v214
    %v216 = vpop.f32.mrf.mxu0
    %v217 = vpop.f32.mrf.mxu0
    %v218 = vadd.f32 0.0, %v217
    %v219 = vpop.f32.mrf.mxu0
    %220 = vmatprep.mubr.bf16.mxu0 0
    %221 = vmatmul.mubr.bf16.gmra.mxu0 %v128
    %v222 = vpop.f32.mrf.mxu0
    %v223 = vadd.f32 0.0, %v222
    %v224 = vpop.f32.mrf.mxu0
    %v225 = vpop.f32.mrf.mxu0
    %v226 = vadd.f32 0.0, %v225
    %v227 = vpop.f32.mrf.mxu0
    %228 = vmatprep.mubr.bf16.mxu0 0
    %229 = vmatmul.mubr.bf16.gmra.mxu0 %v129
    %v230 = vpop.f32.mrf.mxu0
    %v231 = vadd.f32 0.0, %v230
    %v232 = vpop.f32.mrf.mxu0
    %v233 = vpop.f32.mrf.mxu0
    %v234 = vadd.f32 0.0, %v233
    %v235 = vpop.f32.mrf.mxu0
    %236 = vmatprep.mubr.bf16.mxu0 0
    %237 = vmatmul.mubr.bf16.gmra.mxu0 %v130
    %v238 = vpop.f32.mrf.mxu0
    %v239 = vadd.f32 0.0, %v238
    %v240 = vpop.f32.mrf.mxu0
    %v241 = vpop.f32.mrf.mxu0
    %v242 = vadd.f32 0.0, %v241
    %v243 = vpop.f32.mrf.mxu0
    %244 = vmatprep.mubr.bf16.mxu0 0
    %245 = vmatmul.mubr.bf16.gmra.mxu0 %v131
    %v246 = vpop.f32.mrf.mxu0
    %v247 = vadd.f32 0.0, %v246
    %v248 = vpop.f32.mrf.mxu0
    %v249 = vpop.f32.mrf.mxu0
    %v250 = vadd.f32 0.0, %v249
    %v251 = vpop.f32.mrf.mxu0
    %252 = vdwg.mxu0
    %253 = vmatprep.subr.bf16.mxu0 0
    %254 = vmatpush1.bf16.msra.mxu0 %v171
    %255 = vmatprep.subr.bf16.mxu0 0
    %256 = vmatpush1.bf16.msra.mxu0 %v170
    %257 = vmatprep.subr.bf16.mxu0 0
    %258 = vmatpush1.bf16.msra.mxu0 %v169
    %259 = vmatprep.subr.bf16.mxu0 0
    %260 = vmatpush1.bf16.msra.mxu0 %v168
    %261 = vmatprep.subr.bf16.mxu0 0
    %262 = vmatpush1.bf16.msra.mxu0 %v167
    %263 = vmatprep.subr.bf16.mxu0 0
    %264 = vmatpush1.bf16.msra.mxu0 %v166
    %265 = vmatprep.subr.bf16.mxu0 0
    %266 = vmatpush1.bf16.msra.mxu0 %v165
    %267 = vmatprep.subr.bf16.mxu0 0
    %268 = vmatpush1.bf16.msra.mxu0 %v164
    %269 = vmatprep.subr.bf16.mxu0 0
    %270 = vmatpush2.bf16.msra.mxu0 0
    %271 = vmatprep.subr.bf16.mxu0 0
    %272 = vmatpush2.bf16.msra.mxu0 0
    %273 = vmatprep.subr.bf16.mxu0 0
    %274 = vmatpush2.bf16.msra.mxu0 0
    %275 = vmatprep.subr.bf16.mxu0 0
    %276 = vmatpush2.bf16.msra.mxu0 0
    %277 = vmatprep.subr.bf16.mxu0 0
    %278 = vmatpush2.bf16.msra.mxu0 0
    %279 = vmatprep.subr.bf16.mxu0 0
    %280 = vmatpush2.bf16.msra.mxu0 0
    %281 = vmatprep.subr.bf16.mxu0 0
    %282 = vmatpush2.bf16.msra.mxu0 0
    %283 = vmatprep.subr.bf16.mxu0 0
    %284 = vmatpush2.bf16.msra.mxu0 0
    %285 = vmatprep.mubr.bf16.mxu0 0
    %286 = vmatmul.mubr.bf16.gmra.mxu0 %v102
    %v287 = vpop.f32.mrf.mxu0
    %v288 = vadd.f32 %v215, %v287
    %v289 = vpop.f32.mrf.mxu0
    %v290 = vpop.f32.mrf.mxu0
    %v291 = vadd.f32 %v218, %v290
    %v292 = vpop.f32.mrf.mxu0
    %293 = vmatprep.mubr.bf16.mxu0 0
    %294 = vmatmul.mubr.bf16.gmra.mxu0 %v103
    %v295 = vpop.f32.mrf.mxu0
    %v296 = vadd.f32 %v223, %v295
    %v297 = vpop.f32.mrf.mxu0
    %v298 = vpop.f32.mrf.mxu0
    %v299 = vadd.f32 %v226, %v298
    %v300 = vpop.f32.mrf.mxu0
    %301 = vmatprep.mubr.bf16.mxu0 0
    %302 = vmatmul.mubr.bf16.gmra.mxu0 %v104
    %v303 = vpop.f32.mrf.mxu0
    %v304 = vadd.f32 %v231, %v303
    %v305 = vpop.f32.mrf.mxu0
    %v306 = vpop.f32.mrf.mxu0
    %v307 = vadd.f32 %v234, %v306
    %v308 = vpop.f32.mrf.mxu0
    %309 = vmatprep.mubr.bf16.mxu0 0
    %310 = vmatmul.mubr.bf16.gmra.mxu0 %v105
    %v311 = vpop.f32.mrf.mxu0
    %v312 = vadd.f32 %v239, %v311
    %v313 = vpop.f32.mrf.mxu0
    %v314 = vpop.f32.mrf.mxu0
    %v315 = vadd.f32 %v242, %v314
    %v316 = vpop.f32.mrf.mxu0
    %317 = vmatprep.mubr.bf16.mxu0 0
    %318 = vmatmul.mubr.bf16.gmra.mxu0 %v106
    %v319 = vpop.f32.mrf.mxu0
    %v320 = vadd.f32 %v247, %v319
    %v321 = vpop.f32.mrf.mxu0
    %v322 = vpop.f32.mrf.mxu0
    %v323 = vadd.f32 %v250, %v322
    %v324 = vpop.f32.mrf.mxu0
    %325 = vdwg.mxu0
    %v326 = vpack.c.bf16 %v291, %v288
    %v327 = vpack.c.bf16 %v299, %v296
    %v328 = vpack.c.bf16 %v307, %v304
    %v329 = vpack.c.bf16 %v315, %v312
    %v330 = vpack.c.bf16 %v323, %v320
    %v331 = vunpack.c.l.bf16 %v326
    %v332 = vunpack.c.l.bf16 %v327
    %v333 = vunpack.c.l.bf16 %v328
    %v334 = vunpack.c.l.bf16 %v329
    %v335 = vunpack.c.l.bf16 %v330
    %v336 = vunpack.c.h.bf16 %v326
    %v337 = vunpack.c.h.bf16 %v327
    %v338 = vunpack.c.h.bf16 %v328
    %v339 = vunpack.c.h.bf16 %v329
    %v340 = vunpack.c.h.bf16 %v330
    %v341 = vsub.f32 %v288, %v331
    %v342 = vsub.f32 %v296, %v332
    %v343 = vsub.f32 %v304, %v333
    %v344 = vsub.f32 %v312, %v334
    %v345 = vsub.f32 %v320, %v335
    %v346 = vsub.f32 %v291, %v336
    %v347 = vsub.f32 %v299, %v337
    %v348 = vsub.f32 %v307, %v338
    %v349 = vsub.f32 %v315, %v339
    %v350 = vsub.f32 %v323, %v340
    %v351 = vpack.c.bf16 %v346, %v341
    %v352 = vpack.c.bf16 %v347, %v342
    %v353 = vpack.c.bf16 %v348, %v343
    %v354 = vpack.c.bf16 %v349, %v344
    %v355 = vpack.c.bf16 %v350, %v345
    %v358 = vunpack.c.l.b16 %v78
    %v359 = vunpack.c.l.b16 %v79
    %v360 = vpack.c.b16 %v359, %v358
    %vm361 = vcmask 130048
    %v363 = vsel %vm361, %v360, 0
    %365 = vmatprep.subr.bf16.mxu0 0
    %366 = vmatpush1.bf16.msra.mxu0 0
    %367 = vmatprep.subr.bf16.mxu0 0
    %368 = vmatpush1.bf16.msra.mxu0 0
    %369 = vmatprep.subr.bf16.mxu0 0
    %370 = vmatpush1.bf16.msra.mxu0 0
    %371 = vmatprep.subr.bf16.mxu0 0
    %372 = vmatpush1.bf16.msra.mxu0 0
    %373 = vmatprep.subr.bf16.mxu0 0
    %374 = vmatpush1.bf16.msra.mxu0 0
    %375 = vmatprep.subr.bf16.mxu0 0
    %376 = vmatpush1.bf16.msra.mxu0 0
    %377 = vmatprep.subr.bf16.mxu0 0
    %378 = vmatpush1.bf16.msra.mxu0 0
    %379 = vmatprep.subr.bf16.mxu0 %v352
    %380 = vmatpush1.bf16.msra.mxu0 %v351
    %381 = vmatprep.subr.bf16.mxu0 0
    %382 = vmatpush2.bf16.msra.mxu0 0
    %383 = vmatprep.subr.bf16.mxu0 0
    %384 = vmatpush2.bf16.msra.mxu0 0
    %385 = vmatprep.subr.bf16.mxu0 0
    %386 = vmatpush2.bf16.msra.mxu0 0
    %387 = vmatprep.subr.bf16.mxu0 0
    %388 = vmatpush2.bf16.msra.mxu0 0
    %389 = vmatprep.subr.bf16.mxu0 0
    %390 = vmatpush2.bf16.msra.mxu0 0
    %391 = vmatprep.subr.bf16.mxu0 0
    %392 = vmatpush2.bf16.msra.mxu0 0
    %393 = vmatprep.subr.bf16.mxu0 0
    %394 = vmatpush2.bf16.msra.mxu0 0
    %395 = vmatprep.subr.bf16.mxu0 0
    %396 = vmatpush2.bf16.msra.mxu0 0
    %397 = vmatprep.mubr.bf16.mxu0 0
    %398 = vmatmul.mubr.bf16.gmra.mxu0 %v363
    %v399 = vpop.f32.mrf.mxu0
    %v400 = vadd.f32 0.0, %v399
    %v401 = vpop.f32.mrf.mxu0
    %v402 = vadd.f32 0.0, %v401
    %v403 = vpop.f32.mrf.mxu0
    %v404 = vadd.f32 0.0, %v403
    %v405 = vpop.f32.mrf.mxu0
    %v406 = vadd.f32 0.0, %v405
    %407 = vdwg.mxu0
    %408 = vmatprep.subr.bf16.mxu0 0
    %409 = vmatpush1.bf16.msra.mxu0 0
    %410 = vmatprep.subr.bf16.mxu0 0
    %411 = vmatpush1.bf16.msra.mxu0 0
    %412 = vmatprep.subr.bf16.mxu0 0
    %413 = vmatpush1.bf16.msra.mxu0 0
    %414 = vmatprep.subr.bf16.mxu0 0
    %415 = vmatpush1.bf16.msra.mxu0 0
    %416 = vmatprep.subr.bf16.mxu0 0
    %417 = vmatpush1.bf16.msra.mxu0 0
    %418 = vmatprep.subr.bf16.mxu0 0
    %419 = vmatpush1.bf16.msra.mxu0 0
    %420 = vmatprep.subr.bf16.mxu0 0
    %421 = vmatpush1.bf16.msra.mxu0 0
    %422 = vmatprep.subr.bf16.mxu0 %v354
    %423 = vmatpush1.bf16.msra.mxu0 %v353
    %424 = vmatprep.subr.bf16.mxu0 0
    %425 = vmatpush2.bf16.msra.mxu0 0
    %426 = vmatprep.subr.bf16.mxu0 0
    %427 = vmatpush2.bf16.msra.mxu0 0
    %428 = vmatprep.subr.bf16.mxu0 0
    %429 = vmatpush2.bf16.msra.mxu0 0
    %430 = vmatprep.subr.bf16.mxu0 0
    %431 = vmatpush2.bf16.msra.mxu0 0
    %432 = vmatprep.subr.bf16.mxu0 0
    %433 = vmatpush2.bf16.msra.mxu0 0
    %434 = vmatprep.subr.bf16.mxu0 0
    %435 = vmatpush2.bf16.msra.mxu0 0
    %436 = vmatprep.subr.bf16.mxu0 0
    %437 = vmatpush2.bf16.msra.mxu0 0
    %438 = vmatprep.subr.bf16.mxu0 0
    %439 = vmatpush2.bf16.msra.mxu0 0
    %440 = vmatprep.mubr.bf16.mxu0 0
    %441 = vmatmul.mubr.bf16.gmra.mxu0 %v363
    %v442 = vpop.f32.mrf.mxu0
    %v443 = vadd.f32 0.0, %v442
    %v444 = vpop.f32.mrf.mxu0
    %v445 = vadd.f32 0.0, %v444
    %v446 = vpop.f32.mrf.mxu0
    %v447 = vadd.f32 0.0, %v446
    %v448 = vpop.f32.mrf.mxu0
    %v449 = vadd.f32 0.0, %v448
    %450 = vdwg.mxu0
    %451 = vmatprep.subr.bf16.mxu0 0
    %452 = vmatpush1.bf16.msra.mxu0 0
    %453 = vmatprep.subr.bf16.mxu0 0
    %454 = vmatpush1.bf16.msra.mxu0 0
    %455 = vmatprep.subr.bf16.mxu0 0
    %456 = vmatpush1.bf16.msra.mxu0 0
    %457 = vmatprep.subr.bf16.mxu0 0
    %458 = vmatpush1.bf16.msra.mxu0 0
    %459 = vmatprep.subr.bf16.mxu0 0
    %460 = vmatpush1.bf16.msra.mxu0 0
    %461 = vmatprep.subr.bf16.mxu0 0
    %462 = vmatpush1.bf16.msra.mxu0 0
    %463 = vmatprep.subr.bf16.mxu0 0
    %464 = vmatpush1.bf16.msra.mxu0 0
    %465 = vmatprep.subr.bf16.mxu0 0
    %466 = vmatpush1.bf16.msra.mxu0 %v355
    %467 = vmatprep.subr.bf16.mxu0 0
    %468 = vmatpush2.bf16.msra.mxu0 0
    %469 = vmatprep.subr.bf16.mxu0 0
    %470 = vmatpush2.bf16.msra.mxu0 0
    %471 = vmatprep.subr.bf16.mxu0 0
    %472 = vmatpush2.bf16.msra.mxu0 0
    %473 = vmatprep.subr.bf16.mxu0 0
    %474 = vmatpush2.bf16.msra.mxu0 0
    %475 = vmatprep.subr.bf16.mxu0 0
    %476 = vmatpush2.bf16.msra.mxu0 0
    %477 = vmatprep.subr.bf16.mxu0 0
    %478 = vmatpush2.bf16.msra.mxu0 0
    %479 = vmatprep.subr.bf16.mxu0 0
    %480 = vmatpush2.bf16.msra.mxu0 0
    %481 = vmatprep.subr.bf16.mxu0 0
    %482 = vmatpush2.bf16.msra.mxu0 0
    %483 = vmatprep.mubr.bf16.mxu0 0
    %484 = vmatmul.mubr.bf16.gmra.mxu0 %v363
    %v485 = vpop.f32.mrf.mxu0
    %v486 = vadd.f32 0.0, %v485
    %v487 = vpop.f32.mrf.mxu0
    %v488 = vpop.f32.mrf.mxu0
    %v489 = vadd.f32 0.0, %v488
    %v490 = vpop.f32.mrf.mxu0
    %491 = vdwg.mxu0
    %492 = vmatprep.subr.bf16.mxu0 0
    %493 = vmatpush1.bf16.msra.mxu0 0
    %494 = vmatprep.subr.bf16.mxu0 0
    %495 = vmatpush1.bf16.msra.mxu0 0
    %496 = vmatprep.subr.bf16.mxu0 0
    %497 = vmatpush1.bf16.msra.mxu0 0
    %498 = vmatprep.subr.bf16.mxu0 0
    %499 = vmatpush1.bf16.msra.mxu0 0
    %500 = vmatprep.subr.bf16.mxu0 0
    %501 = vmatpush1.bf16.msra.mxu0 0
    %502 = vmatprep.subr.bf16.mxu0 0
    %503 = vmatpush1.bf16.msra.mxu0 0
    %504 = vmatprep.subr.bf16.mxu0 0
    %505 = vmatpush1.bf16.msra.mxu0 0
    %506 = vmatprep.subr.bf16.mxu0 %v327
    %507 = vmatpush1.bf16.msra.mxu0 %v326
    %508 = vmatprep.subr.bf16.mxu0 0
    %509 = vmatpush2.bf16.msra.mxu0 0
    %510 = vmatprep.subr.bf16.mxu0 0
    %511 = vmatpush2.bf16.msra.mxu0 0
    %512 = vmatprep.subr.bf16.mxu0 0
    %513 = vmatpush2.bf16.msra.mxu0 0
    %514 = vmatprep.subr.bf16.mxu0 0
    %515 = vmatpush2.bf16.msra.mxu0 0
    %516 = vmatprep.subr.bf16.mxu0 0
    %517 = vmatpush2.bf16.msra.mxu0 0
    %518 = vmatprep.subr.bf16.mxu0 0
    %519 = vmatpush2.bf16.msra.mxu0 0
    %520 = vmatprep.subr.bf16.mxu0 0
    %521 = vmatpush2.bf16.msra.mxu0 0
    %522 = vmatprep.subr.bf16.mxu0 0
    %523 = vmatpush2.bf16.msra.mxu0 0
    %524 = vmatprep.mubr.bf16.mxu0 0
    %525 = vmatmul.mubr.bf16.gmra.mxu0 %v363
    %v526 = vpop.f32.mrf.mxu0
    %v527 = vadd.f32 %v400, %v526
    %v528 = vpop.f32.mrf.mxu0
    %v529 = vadd.f32 %v402, %v528
    %v530 = vpop.f32.mrf.mxu0
    %v531 = vadd.f32 %v404, %v530
    %v532 = vpop.f32.mrf.mxu0
    %v533 = vadd.f32 %v406, %v532
    %534 = vdwg.mxu0
    %535 = vmatprep.subr.bf16.mxu0 0
    %536 = vmatpush1.bf16.msra.mxu0 0
    %537 = vmatprep.subr.bf16.mxu0 0
    %538 = vmatpush1.bf16.msra.mxu0 0
    %539 = vmatprep.subr.bf16.mxu0 0
    %540 = vmatpush1.bf16.msra.mxu0 0
    %541 = vmatprep.subr.bf16.mxu0 0
    %542 = vmatpush1.bf16.msra.mxu0 0
    %543 = vmatprep.subr.bf16.mxu0 0
    %544 = vmatpush1.bf16.msra.mxu0 0
    %545 = vmatprep.subr.bf16.mxu0 0
    %546 = vmatpush1.bf16.msra.mxu0 0
    %547 = vmatprep.subr.bf16.mxu0 0
    %548 = vmatpush1.bf16.msra.mxu0 0
    %549 = vmatprep.subr.bf16.mxu0 %v329
    %550 = vmatpush1.bf16.msra.mxu0 %v328
    %551 = vmatprep.subr.bf16.mxu0 0
    %552 = vmatpush2.bf16.msra.mxu0 0
    %553 = vmatprep.subr.bf16.mxu0 0
    %554 = vmatpush2.bf16.msra.mxu0 0
    %555 = vmatprep.subr.bf16.mxu0 0
    %556 = vmatpush2.bf16.msra.mxu0 0
    %557 = vmatprep.subr.bf16.mxu0 0
    %558 = vmatpush2.bf16.msra.mxu0 0
    %559 = vmatprep.subr.bf16.mxu0 0
    %560 = vmatpush2.bf16.msra.mxu0 0
    %561 = vmatprep.subr.bf16.mxu0 0
    %562 = vmatpush2.bf16.msra.mxu0 0
    %563 = vmatprep.subr.bf16.mxu0 0
    %564 = vmatpush2.bf16.msra.mxu0 0
    %565 = vmatprep.subr.bf16.mxu0 0
    %566 = vmatpush2.bf16.msra.mxu0 0
    %567 = vmatprep.mubr.bf16.mxu0 0
    %568 = vmatmul.mubr.bf16.gmra.mxu0 %v363
    %v569 = vpop.f32.mrf.mxu0
    %v570 = vadd.f32 %v443, %v569
    %v571 = vpop.f32.mrf.mxu0
    %v572 = vadd.f32 %v445, %v571
    %v573 = vpop.f32.mrf.mxu0
    %v574 = vadd.f32 %v447, %v573
    %v575 = vpop.f32.mrf.mxu0
    %v576 = vadd.f32 %v449, %v575
    %577 = vdwg.mxu0
    %578 = vmatprep.subr.bf16.mxu0 0
    %579 = vmatpush1.bf16.msra.mxu0 0
    %580 = vmatprep.subr.bf16.mxu0 0
    %581 = vmatpush1.bf16.msra.mxu0 0
    %582 = vmatprep.subr.bf16.mxu0 0
    %583 = vmatpush1.bf16.msra.mxu0 0
    %584 = vmatprep.subr.bf16.mxu0 0
    %585 = vmatpush1.bf16.msra.mxu0 0
    %586 = vmatprep.subr.bf16.mxu0 0
    %587 = vmatpush1.bf16.msra.mxu0 0
    %588 = vmatprep.subr.bf16.mxu0 0
    %589 = vmatpush1.bf16.msra.mxu0 0
    %590 = vmatprep.subr.bf16.mxu0 0
    %591 = vmatpush1.bf16.msra.mxu0 0
    %592 = vmatprep.subr.bf16.mxu0 0
    %593 = vmatpush1.bf16.msra.mxu0 %v330
    %594 = vmatprep.subr.bf16.mxu0 0
    %595 = vmatpush2.bf16.msra.mxu0 0
    %596 = vmatprep.subr.bf16.mxu0 0
    %597 = vmatpush2.bf16.msra.mxu0 0
    %598 = vmatprep.subr.bf16.mxu0 0
    %599 = vmatpush2.bf16.msra.mxu0 0
    %600 = vmatprep.subr.bf16.mxu0 0
    %601 = vmatpush2.bf16.msra.mxu0 0
    %602 = vmatprep.subr.bf16.mxu0 0
    %603 = vmatpush2.bf16.msra.mxu0 0
    %604 = vmatprep.subr.bf16.mxu0 0
    %605 = vmatpush2.bf16.msra.mxu0 0
    %606 = vmatprep.subr.bf16.mxu0 0
    %607 = vmatpush2.bf16.msra.mxu0 0
    %608 = vmatprep.subr.bf16.mxu0 0
    %609 = vmatpush2.bf16.msra.mxu0 0
    %610 = vmatprep.mubr.bf16.mxu0 0
    %611 = vmatmul.mubr.bf16.gmra.mxu0 %v363
    %v612 = vpop.f32.mrf.mxu0
    %v613 = vadd.f32 %v486, %v612
    %v614 = vpop.f32.mrf.mxu0
    %v615 = vpop.f32.mrf.mxu0
    %v616 = vadd.f32 %v489, %v615
    %v617 = vpop.f32.mrf.mxu0
    %618 = vdwg.mxu0
    %v619 = vmul.f32 %v527, %v529
    %v620 = vmul.f32 %v531, %v533
    %v621 = vmul.f32 %v619, 0.0022675737
    %v622 = vmul.f32 %v620, 0.0022675737
    %v623 = vsub.f32 %v613, %v621
    %v624 = vsub.f32 %v616, %v622
    %v625 = vmul.f32 %v527, %v527
    %v626 = vmul.f32 %v531, %v531
    %v627 = vmul.f32 %v625, 0.0022675737
    %v628 = vmul.f32 %v626, 0.0022675737
    %v629 = vsub.f32 %v570, %v627
    %v630 = vsub.f32 %v574, %v628
    %v631 = vmul.f32 %v529, %v529
    %v632 = vmul.f32 %v533, %v533
    %v633 = vmul.f32 %v631, 0.0022675737
    %v634 = vmul.f32 %v632, 0.0022675737
    %v635 = vsub.f32 %v572, %v633
    %v636 = vsub.f32 %v576, %v634
    %v637 = vmul.f32 %v623, %v623
    %v638 = vmul.f32 %v624, %v624
    %v639 = vmul.f32 %v629, %v635
    %v640 = vmul.f32 %v630, %v636
    %v641 = vadd.f32 %v639, 1e-05
    %v642 = vadd.f32 %v640, 1e-05
    %v643 = vrcp.pop %v641
    %v644 = vmul.f32 %v637, %v643
    %v645 = vrcp.pop %v642
    %v646 = vmul.f32 %v638, %v645
    %v647 = vadd.f32 %v644, 0.0
    %v648 = vadd.f32 %v647, %v646
    %649 = vst [vmem:[#allocation10] sm:$0xff] %v648
    // Predicated region
    $region34: #{tpu_custom_call.1} parent=1 // pred_check
      _
    $region35: #{tpu_custom_call.1} parent=1 // pred_check_branch
      %651 = sbr.rel (0) target = $region37
    $region36: #{tpu_custom_call.1} parent=1 // pred_region
      %s653 = ssub.s32 128, 128
      %654 = vsyncadd [#allocation4], %s653
      %s656 = sshll.u32 [#allocation10], 4
      %s657 = int_to_ptr.vmem [resolvable:$true] %s656
      %659 = dma.vmem_to_hbm [thread:$0]  %s657, 128, %s4, [#allocation4]
    $region37: #{tpu_custom_call.1} parent=1 // pred_fallthru
      _
    // Predicated region
    $region38: #{tpu_custom_call.1} parent=1 // pred_check
      _
    $region39: #{tpu_custom_call.1} parent=1 // pred_check_branch
      %661 = sbr.rel (0) target = $region41
    $region40: #{tpu_custom_call.1} parent=1 // pred_region
      %662 = dma.done [#allocation4], 128
    $region41: #{tpu_custom_call.1} parent=1 // pred_fallthru
      _
    %663 = vsyncpa [#allocation3], 1
    %664 = vsyncpa [#allocation6], 1
    %665 = vsyncpa [#allocation9], 1
    %666 = vsyncpa [#allocation4], 1

</llo_original>
